<compile_context>
chip_gen: v7x
topology: tpu7x:2x2x1
jax: 0.10.0
libtpu: 0.0.40
codegen_flags: <defaults>
</compile_context>

<pallas_src>
import jax
import jax.numpy as jnp
from jax.experimental import pallas as pl
from jax.experimental.pallas import tpu as pltpu


def _copy_kernel(x_ref, o_ref):
    # Pure VMEM block copy.  The channel duplication is done by the output
    # index_map (size-2 innermost grid axis writes the same input block into
    # both channel halves), so there is no concat / sublane relayout here.
    o_ref[...] = x_ref[...]


def make_concat2conv_weight(input_nc: int, dtype=jnp.float32) -> jnp.ndarray:
    """Deterministic weight identical to the PyTorch buffer, shape (2C, C, 1, 1)."""
    eye = jnp.eye(input_nc, dtype=dtype)
    w2d = jnp.concatenate([eye, eye], axis=0)  # (2C, C)
    return w2d.reshape(2 * input_nc, input_nc, 1, 1)


def concat2conv(x: jnp.ndarray, *, block_bytes: int = 2 * 1024 * 1024) -> jnp.ndarray:
    """x: (N, C, H, W) NCHW.  Returns (N, 2C, H, W) == concat(x, x) on channels."""
    N, C, H, W = x.shape
    OC = 2 * C
    CHW = C * H * W
    itemsize = jnp.dtype(x.dtype).itemsize

    if CHW % 128 == 0:
        # Dense path: view each batch slab as (M, 128) rows (free reshape) so
        # blocks are fully lane- and sublane-dense regardless of C.
        L = 128
        M = CHW // L
        rb = max(8, (block_bytes // (L * itemsize)) // 8 * 8)  # rows per block
        Rb = M if M <= rb else rb                               # full dim or mult-of-8
        x_view = x.reshape(N, M, L)
        grid = (N, pl.cdiv(M, Rb), 2)
        in_spec = pl.BlockSpec((pl.Squeezed(), Rb, L),
                               lambda n, t, h: (n, t, 0))
        out_spec = pl.BlockSpec((pl.Squeezed(), pl.Squeezed(), Rb, L),
                                lambda n, t, h: (n, h, t, 0))
        out_struct = jax.ShapeDtypeStruct((N, 2, M, L), x.dtype)
    else:
        # Fallback (CHW not a multiple of 128): (C, HW) blocks with a
        # byte-budgeted, lane-tiled pixel axis; the last tile (if any) is a
        # masked partial tile — no wrapper-side pad / slice HBM passes.
        HW = H * W
        t_budget = max(128, (block_bytes // (max(C, 1) * itemsize)) // 128 * 128)
        T = HW if HW <= t_budget else t_budget
        x_view = x.reshape(N, C, HW)
        grid = (N, pl.cdiv(HW, T), 2)
        in_spec = pl.BlockSpec((pl.Squeezed(), C, T),
                               lambda n, t, h: (n, 0, t))
        out_spec = pl.BlockSpec((pl.Squeezed(), pl.Squeezed(), C, T),
                                lambda n, t, h: (n, h, 0, t))
        out_struct = jax.ShapeDtypeStruct((N, 2, C, HW), x.dtype)

    # Note: if profiling ever shows exposed output-writeback DMA, adding
    # pipeline_mode=pl.Buffered(3) to out_spec is a cheap follow-up.
    out = pl.pallas_call(
        _copy_kernel,
        out_shape=out_struct,
        grid_spec=pltpu.PrefetchScalarGridSpec(
            num_scalar_prefetch=0,
            grid=grid,
            in_specs=[in_spec],
            out_specs=out_spec,
        ),
        compiler_params=pltpu.CompilerParams(
            dimension_semantics=("parallel", "parallel", "arbitrary"),
            vmem_limit_bytes=32 * 1024 * 1024,
        ),
    )(x_view)

    # Reshape of a contiguous array: free (no HBM pass).
    return out.reshape(N, OC, H, W)


if __name__ == "__main__":
    key = jax.random.PRNGKey(0)
    k0, k1, k2, k3 = jax.random.split(key, 4)

    # 1) Main test: small aligned shape, f32, checked against both the channel
    #    concat and the actual 1x1 conv with the PyTorch-style weight buffer.
    N, C, H, W = 2, 4, 16, 16
    x = jax.random.normal(k0, (N, C, H, W), dtype=jnp.float32)
    out = jax.block_until_ready(concat2conv(x))

    ref_concat = jnp.concatenate([x, x], axis=1)
    w = make_concat2conv_weight(C, dtype=jnp.float32)
    ref_conv = jax.lax.conv_general_dilated(
        x, w, window_strides=(1, 1), padding="VALID",
        dimension_numbers=("NCHW", "OIHW", "NCHW"))

    assert out.shape == (N, 2 * C, H, W), out.shape
    assert jnp.allclose(out, ref_concat, atol=1e-6, rtol=1e-6)
    assert jnp.allclose(out, ref_conv, atol=1e-6, rtol=1e-6)

    # 2) Dense path with a masked partial edge tile (M=10 rows, Rb=8 rows).
    x2 = jax.random.normal(k1, (2, 8, 10, 16), dtype=jnp.float32)
    out2 = jax.block_until_ready(concat2conv(x2, block_bytes=8 * 128 * 4))
    assert jnp.array_equal(out2, jnp.concatenate([x2, x2], axis=1))

    # 3) Fallback path: C*H*W not a multiple of 128.
    x3 = jax.random.normal(k2, (2, 3, 5, 7), dtype=jnp.float32)
    out3 = jax.block_until_ready(concat2conv(x3))
    assert jnp.array_equal(out3, jnp.concatenate([x3, x3], axis=1))

    # 4) bf16 input, dense path.
    x4 = jax.random.normal(k3, (2, 4, 16, 16), dtype=jnp.bfloat16)
    out4 = jax.block_until_ready(concat2conv(x4))
    assert jnp.array_equal(out4, jnp.concatenate([x4, x4], axis=1))

    print("KERNEL_OK")
</pallas_src>

<mosaic_0001>
module attributes {stable_mosaic.version = 11 : i64} {
  func.func @_copy_kernel(%arg0: i32, %arg1: i32, %arg2: i32, %arg3: memref<1x8x128xf32, #tpu.memory_space<vmem>>, %arg4: memref<1x1x8x128xf32, #tpu.memory_space<vmem>>) attributes {dimension_semantics = [#tpu.dimension_semantics<parallel>, #tpu.dimension_semantics<parallel>, #tpu.dimension_semantics<arbitrary>], iteration_bounds = array<i64: 2, 1, 2>, scalar_prefetch = 0 : i64, scratch_operands = 0 : i64, tpu.core_type = #tpu.core_type<tc>, window_params = [{transform_indices = @transform_0, window_bounds = array<i64: 1, 8, 128>}, {transform_indices = @transform_1, window_bounds = array<i64: 1, 1, 8, 128>}]} {
    %c0 = arith.constant 0 : index
    %c0_0 = arith.constant 0 : index
    %c0_1 = arith.constant 0 : index
    %0 = vector.load %arg3[%c0, %c0_0, %c0_1] : memref<1x8x128xf32, #tpu.memory_space<vmem>>, vector<1x8x128xf32>
    %1 = vector.shape_cast %0 : vector<1x8x128xf32> to vector<8x128xf32>
    %c0_2 = arith.constant 0 : index
    %c0_3 = arith.constant 0 : index
    %c0_4 = arith.constant 0 : index
    %c0_5 = arith.constant 0 : index
    %2 = vector.load %arg4[%c0_2, %c0_3, %c0_4, %c0_5] : memref<1x1x8x128xf32, #tpu.memory_space<vmem>>, vector<1x1x8x128xf32>
    %3 = vector.shape_cast %2 : vector<1x1x8x128xf32> to vector<8x128xf32>
    %4 = vector.shape_cast %1 : vector<8x128xf32> to vector<1x1x8x128xf32>
    tpu.vector_store %arg4[%c0_2, %c0_3, %c0_4, %c0_5], %4 {strides = array<i32>} : memref<1x1x8x128xf32, #tpu.memory_space<vmem>>, vector<1x1x8x128xf32>,
    return
  }
  func.func @transform_0(%arg0: i32, %arg1: i32, %arg2: i32) -> (i32, i32, i32) {
    %c0_i32 = arith.constant 0 : i32
    %c0_i32_0 = arith.constant 0 : i32
    return %arg0, %arg1, %c0_i32 : i32, i32, i32
  }
  func.func @transform_1(%arg0: i32, %arg1: i32, %arg2: i32) -> (i32, i32, i32, i32) {
    %c0_i32 = arith.constant 0 : i32
    %c0_i32_0 = arith.constant 0 : i32
    return %arg0, %arg2, %arg1, %c0_i32 : i32, i32, i32, i32
  }
}

</mosaic_0001>

<llo_original>
// kernel: tpu_custom_call.1
$region0: #{tpu_custom_call.1}
  #allocation0 [shape = 'u32[]', space=smem, size = 0x4, offset = 0x4, fixed_abs, tag = 'smem constant byte address 0x4 - core index']
  #allocation1 [shape = 'u32[144,128]{1,0:T(1,128)}', space=vmem, size = 0x12000, scoped, tag = 'internal scratch']
  %s0 = inlined_call_operand.hbm [shape: f32[2,8,128], index: 0, kind: input, shape index: {}]
  %s1 = inlined_call_operand.hbm [shape: f32[2,2,8,128], index: 1, kind: output, shape index: {}]
  %s2 = sld [smem:[#allocation0]]
  $region41: #{tpu_custom_call.1} parent=0
    _
  %s4 = ssub.s32 1, %s2
  %s5 = scalar_select 0, %s4, %s2
  $region1: #{tpu_custom_call.1} parent=0
    #allocation2 [shape = 'u8[8192]{0}', space=vmem, size = 0x2000, scoped, tag = 'input window, operand 0']
    #allocation3 [shape = 's32[2]{0}', space=sflag, size = 0x8, scoped, tag = 'scoped memory for tpu_custom_call.1']
    #allocation4 [shape = 's32[2]{0}', space=sflag, size = 0x8, scoped, tag = 'scoped memory for tpu_custom_call.1']
    #allocation5 [shape = 'u8[8192]{0}', space=vmem, size = 0x2000, scoped, tag = 'output window, operand 0']
    %6 = vsyncpa [#allocation3], 0
    %s7 = scalar_lea.sflag [#allocation3], 1
    %8 = vsyncpa %s7, 0
    %9 = vsyncpa [#allocation4], 0
    %s10 = scalar_lea.sflag [#allocation4], 1
    %11 = vsyncpa %s10, 0
    loop: start=0, step=1, limit=6
    $region2: #{tpu_custom_call.1} parent=1 // loop_pre_header
      _
    $region3: #{tpu_custom_call.1} parent=1 // loop_header
      %s13 = sphi 0, %s17
      %p14 = scmp.ge.s32.totalorder %s13, 6
      %s20 = sphi 0, %s39
      %s21 = sphi 0, %s35
      %s22 = sphi 0, %s31
      %s23 = sphi 0, %s20
      %s24 = sphi 0, %s21
      %s25 = sphi 0, %s22
      %s26 = sphi 0, %s23
      %s27 = sphi 0, %s24
      %s28 = sphi 0, %s25
      %s44 = sphi 0, %s46
      %s47 = sphi 0, %s44
      %s48 = sphi 0, %s47
      %s64 = sphi 0, %s48
      %s74 = sphi 0, %s76
      %s77 = sphi 0, %s74
      %s78 = sphi 0, %s77
      %s94 = sphi 0, %s78
    $region4: #{tpu_custom_call.1} parent=1 // loop_header_branch
      %16 = sbr.rel (%p14) target = $region8
    $region5: #{tpu_custom_call.1} parent=1 // loop_body
      %s18 = ssub.s32 %s13, 1
      %s19 = ssub.s32 %s13, 2
      %s29 = sadd.s32 1, %s22
      %p30 = scmp.ge.s32.totalorder %s29, 2
      %s31 = scalar_select %p30, 0, %s29
      %s32 = sadd.s32 1, %s21
      %s33 = scalar_select %p30, %s32, %s21
      %p34 = scmp.ge.s32.totalorder %s33, 1
      %s35 = scalar_select %p34, 0, %s33
      %s36 = sadd.s32 1, %s20
      %s37 = scalar_select %p34, %s36, %s20
      %p38 = scmp.ge.s32.totalorder %s37, 2
      %s39 = scalar_select %p38, 0, %s37
      %s40 = ssub.s32 %s20, %s39
      %s41 = ssub.s32 %s21, %s35
      %s42 = sor.u32 %s40, %s41
      %p43 = scmp.eq.s32.totalorder %s42, 0
      %s45 = sadd.s32 %s44, 1
      %s46 = scalar_select %p43, %s44, %s45
      %p49 = pneg %p43
      %p50 = scmp.eq.s32.totalorder %s13, 3
      %p51 = por %p49, %p50
      %p52 = scmp.ne.s32.totalorder %s44, %s47
      %p53 = scmp.eq.s32.totalorder %s13, 0
      %p54 = por %p52, %p53
      %p55 = scmp.ne.s32.totalorder %s44, %s47
      %p56 = scmp.eq.s32.totalorder %s18, 3
      %p57 = por %p55, %p56
      %p58 = scmp.ne.s32.totalorder %s47, %s48
      %p59 = scmp.eq.s32.totalorder %s18, 0
      %p60 = por %p58, %p59
      %p61 = scmp.ne.s32.totalorder %s47, %s48
      %p62 = scmp.eq.s32.totalorder %s19, 3
      %p63 = por %p61, %p62
      %p65 = scmp.ne.s32.totalorder %s48, %s64
      %p66 = scmp.eq.s32.totalorder %s19, 0
      %p67 = por %p65, %p66
      %s68 = ssub.s32 %s20, %s39
      %s69 = ssub.s32 %s22, %s31
      %s70 = sor.u32 %s68, %s69
      %s71 = ssub.s32 %s21, %s35
      %s72 = sor.u32 %s70, %s71
      %p73 = scmp.eq.s32.totalorder %s72, 0
      %s75 = sadd.s32 %s74, 1
      %s76 = scalar_select %p73, %s74, %s75
      %p79 = pneg %p73
      %p80 = scmp.eq.s32.totalorder %s13, 3
      %p81 = por %p79, %p80
      %p82 = scmp.ne.s32.totalorder %s74, %s77
      %p83 = scmp.eq.s32.totalorder %s13, 0
      %p84 = por %p82, %p83
      %p85 = scmp.ne.s32.totalorder %s74, %s77
      %p86 = scmp.eq.s32.totalorder %s18, 3
      %p87 = por %p85, %p86
      %p88 = scmp.ne.s32.totalorder %s77, %s78
      %p89 = scmp.eq.s32.totalorder %s18, 0
      %p90 = por %p88, %p89
      %p91 = scmp.ne.s32.totalorder %s77, %s78
      %p92 = scmp.eq.s32.totalorder %s19, 3
      %p93 = por %p91, %p92
      %p95 = scmp.ne.s32.totalorder %s78, %s94
      %p96 = scmp.eq.s32.totalorder %s19, 0
      %p97 = por %p95, %p96
      %p98 = scmp.le.s32.totalorder 1, %s13
      %p99 = scmp.lt.s32.totalorder %s13, 5
      %p100 = pnand %p98, %p99
      %p101 = pneg %p100
      // Predicated region
      $region9: #{tpu_custom_call.1} parent=5 // pred_check
        _
      $region10: #{tpu_custom_call.1} parent=5 // pred_check_branch
        %103 = sbr.rel (%p100) target = $region12
      $region11: #{tpu_custom_call.1} parent=5 // pred_region
        %s104 = ssub.s32 %s13, 1
      $region12: #{tpu_custom_call.1} parent=5 // pred_fallthru
        _
      %p105 = scmp.lt.s32.totalorder %s13, 4
      // Predicated region
      $region13: #{tpu_custom_call.1} parent=5 // pred_check
        %p106 = pneg %p105
      $region14: #{tpu_custom_call.1} parent=5 // pred_check_branch
        %108 = sbr.rel (%p106) target = $region16
      $region15: #{tpu_custom_call.1} parent=5 // pred_region
        // Predicated region
        $region17: #{tpu_custom_call.1} parent=15 // pred_check
          %p109 = pneg %p54
        $region18: #{tpu_custom_call.1} parent=15 // pred_check_branch
          %111 = sbr.rel (%p109) target = $region20
        $region19: #{tpu_custom_call.1} parent=15 // pred_region
          %s112 = sand.u32 %s44, 1
          %s113 = scalar_lea.sflag [#allocation3], %s112
          %s114 = sand.u32 %s44, 1
          %s115 = smul.addr %s114, 8
          %s116 = scalar_lea.vmem [#allocation2], %s115
          %s118 = ssub.s32 128, 128
          %119 = vsyncadd %s113, %s118
          %s120 = sadd.s32 %s21, %s20
          %s121 = smul.addr %s120, 128
          %s122 = scalar_lea.hbm %s0, %s121
          %s124 = sshll.u32 %s116, 4
          %s125 = int_to_ptr.vmem [resolvable:$true] %s124
          %127 = dma.hbm_to_vmem [thread:$0]  %s122, 128, %s125, %s113
        $region20: #{tpu_custom_call.1} parent=15 // pred_fallthru
          _
      $region16: #{tpu_custom_call.1} parent=5 // pred_fallthru
        _
      %p128 = scmp.le.s32.totalorder 1, %s13
      %p129 = scmp.lt.s32.totalorder %s13, 5
      %p130 = pnand %p128, %p129
      %p131 = pneg %p130
      // Predicated region
      $region21: #{tpu_custom_call.1} parent=5 // pred_check
        _
      $region22: #{tpu_custom_call.1} parent=5 // pred_check_branch
        %133 = sbr.rel (%p130) target = $region24
      $region23: #{tpu_custom_call.1} parent=5 // pred_region
        %s134 = ssub.s32 %s13, 1
        %s135 = sand.u32 %s47, 1
        %s136 = scalar_lea.sflag [#allocation3], %s135
        %s137 = sand.u32 %s47, 1
        %s138 = smul.addr %s137, 8
        %s139 = scalar_lea.vmem [#allocation2], %s138
        // Predicated region
        $region25: #{tpu_custom_call.1} parent=23 // pred_check
          %p140 = pneg %p60
        $region26: #{tpu_custom_call.1} parent=23 // pred_check_branch
          %142 = sbr.rel (%p140) target = $region28
        $region27: #{tpu_custom_call.1} parent=23 // pred_region
          %143 = dma.done %s136, 128
        $region28: #{tpu_custom_call.1} parent=23 // pred_fallthru
          _
        %s144 = sand.u32 %s47, 1
        %s145 = scalar_lea.sflag [#allocation3], %s144
        %s146 = sand.u32 %s47, 1
        %s147 = smul.addr %s146, 8
        %s148 = scalar_lea.vmem [#allocation2], %s147
        %p149 = pneg %p60
        %p150 = pneg %p57
        %p151 = pneg %p90
        %p152 = pneg %p87
        %s153 = sand.u32 %s77, 1
        %s154 = scalar_lea.sflag [#allocation4], %s153
        %s155 = sand.u32 %s77, 1
        %s156 = smul.addr %s155, 8
        %s157 = scalar_lea.vmem [#allocation5], %s156
        %v158 = vld [vmem:[%s139] sm:$0xff]
        %159 = vst [vmem:[%s157] sm:$0xff] %v158
        %s160 = sand.u32 %s77, 1
        %s161 = scalar_lea.sflag [#allocation4], %s160
        %s162 = sand.u32 %s77, 1
        %s163 = smul.addr %s162, 8
        %s164 = scalar_lea.vmem [#allocation5], %s163
        // Predicated region
        $region29: #{tpu_custom_call.1} parent=23 // pred_check
          %p165 = pneg %p87
        $region30: #{tpu_custom_call.1} parent=23 // pred_check_branch
          %167 = sbr.rel (%p165) target = $region32
        $region31: #{tpu_custom_call.1} parent=23 // pred_region
          %s169 = ssub.s32 128, 128
          %170 = vsyncadd %s161, %s169
          %s171 = sadd.s32 %s24, %s25
          %s172 = smul.addr %s23, 2
          %s173 = sadd.s32 %s171, %s172
          %s174 = smul.addr %s173, 128
          %s175 = scalar_lea.hbm %s1, %s174
          %s177 = sshll.u32 %s164, 4
          %s178 = int_to_ptr.vmem [resolvable:$true] %s177
          %180 = dma.vmem_to_hbm [thread:$0]  %s178, 128, %s175, %s161
        $region32: #{tpu_custom_call.1} parent=23 // pred_fallthru
          _
      $region24: #{tpu_custom_call.1} parent=5 // pred_fallthru
        _
      %p181 = scmp.le.s32.totalorder 2, %s13
      // Predicated region
      $region33: #{tpu_custom_call.1} parent=5 // pred_check
        %p182 = pneg %p181
      $region34: #{tpu_custom_call.1} parent=5 // pred_check_branch
        %184 = sbr.rel (%p182) target = $region36
      $region35: #{tpu_custom_call.1} parent=5 // pred_region
        %s185 = ssub.s32 %s13, 2
        // Predicated region
        $region37: #{tpu_custom_call.1} parent=35 // pred_check
          %p186 = pneg %p93
        $region38: #{tpu_custom_call.1} parent=35 // pred_check_branch
          %188 = sbr.rel (%p186) target = $region40
        $region39: #{tpu_custom_call.1} parent=35 // pred_region
          %s189 = sand.u32 %s78, 1
          %s190 = scalar_lea.sflag [#allocation4], %s189
          %s191 = sand.u32 %s78, 1
          %s192 = smul.addr %s191, 8
          %s193 = scalar_lea.vmem [#allocation5], %s192
          %194 = dma.done %s190, 128
        $region40: #{tpu_custom_call.1} parent=35 // pred_fallthru
          _
      $region36: #{tpu_custom_call.1} parent=5 // pred_fallthru
        _
    $region6: #{tpu_custom_call.1} parent=1 // loop_footer
      %s17 = sadd.s32 1, %s13
    $region7: #{tpu_custom_call.1} parent=1 // loop_footer_branch
      %12 = sbr.rel target = $region3
    $region8: #{tpu_custom_call.1} parent=1 // loop_exit
      _
    %195 = vsyncpa [#allocation3], 1
    %s196 = scalar_lea.sflag [#allocation3], 1
    %197 = vsyncpa %s196, 1
    %198 = vsyncpa [#allocation4], 1
    %s199 = scalar_lea.sflag [#allocation4], 1
    %200 = vsyncpa %s199, 1

</llo_original>
